<compile_context>
chip_gen: v7x
topology: tpu7x:2x2x1
jax: 0.10.0
libtpu: 0.0.40
codegen_flags: <defaults>
</compile_context>

<pallas_src>
import math

import jax
import jax.numpy as jnp
from jax.experimental import pallas as pl
from jax.experimental.pallas import tpu as pltpu


# ---------------------------------------------------------------------------
# Fused Pallas kernel: proj + relu + conv1/bn1/relu + conv2/bn2 + residual
# ---------------------------------------------------------------------------

def _concat_block_kernel(x_ref, y_ref, wpa_ref, wpb_ref, w1_ref, w2_ref,
                         cst_ref, shift_ref, o_ref):
    """Whole ConcatBlock for one lane-packed group of images.

    Activations live as [H, L] with L = PACK * W * C (128 lanes here).
    Matmul operands are bf16; accumulation / BN / relu / residual are f32.
    """
    f32 = jnp.float32
    h = o_ref.shape[0]
    l = o_ref.shape[1]

    # Coalesced per-lane constants (f32): rows = [b_proj, s1, t1, s2, t2].
    bp = cst_ref[0:1, :]
    s1 = cst_ref[1:2, :]
    t1 = cst_ref[2:3, :]
    s2 = cst_ref[3:4, :]
    t2 = cst_ref[4:5, :]

    # Row-shift matrices for SAME padding along H (zero boundary rows are
    # built into the missing diagonal entries -> no mask, no halo scratch).
    sd = shift_ref[0:h, :]       # eye(H, k=-1): out[r] += m0[r-1], row 0 -> 0
    su = shift_ref[h:2 * h, :]   # eye(H, k=+1): out[r] += m2[r+1], row H-1 -> 0

    # --- proj: relu(1x1 conv of cat([x, y], channel)) == x @ Wa + y @ Wb ----
    h0 = jnp.dot(x_ref[...], wpa_ref[...], preferred_element_type=f32)
    h0 = h0 + jnp.dot(y_ref[...], wpb_ref[...], preferred_element_type=f32)
    h0 = jnp.maximum(h0 + bp, 0.0)

    def conv3x3(v_f32, wcat_ref):
        # SAME 3x3 conv: channel contraction + W padding folded into the
        # block-banded [L, 3L] weight (three dy bands concatenated along the
        # output axis -> ONE MXU matmul); H padding via the two sub-diagonal
        # shift matmuls above (tiny [H,H]@[H,L], boundary rows zeroed free).
        m = jnp.dot(v_f32.astype(jnp.bfloat16), wcat_ref[...],
                    preferred_element_type=f32)                      # [H, 3L]
        m0 = m[:, :l]
        m1 = m[:, l:2 * l]
        m2 = m[:, 2 * l:]
        return (m1
                + jnp.dot(sd, m0, preferred_element_type=f32)
                + jnp.dot(su, m2, preferred_element_type=f32))

    # --- res_block ----------------------------------------------------------
    h1 = jnp.maximum(conv3x3(h0, w1_ref) * s1 + t1, 0.0)
    h2 = conv3x3(h1, w2_ref) * s2 + t2
    o_ref[...] = jnp.maximum(h0 + h2, 0.0).astype(o_ref.dtype)


# ---------------------------------------------------------------------------
# Parameter preparation for the lane-packed [H, PACK*W*C] layout (runs in XLA)
# ---------------------------------------------------------------------------

def _banded_conv_weight(w_hwio, width, c, pack):
    """[3,3,Cin,Cout] -> [PACK*W*C, 3*PACK*W*C] block-banded weight.

    Channel contraction + SAME padding along W are folded in; the three dy
    bands are concatenated along the output axis; the whole matrix is
    block-diagonal over the PACK lane-packed images.
    """
    wc = width * c
    bands = []
    for dy in range(3):
        m = jnp.zeros((wc, wc), jnp.float32)
        for dx in range(3):
            band = jnp.eye(width, k=1 - dx, dtype=jnp.float32)
            m = m + jnp.kron(band, w_hwio[dy, dx])
        bands.append(jnp.kron(jnp.eye(pack, dtype=jnp.float32), m))
    return jnp.concatenate(bands, axis=1)                    # [L, 3L]


def _prepare_lane_params(p, width, c, pack, height):
    lanes = pack * width * c
    eye_pw = jnp.eye(pack * width, dtype=jnp.float32)
    tile = lambda v: jnp.tile(jnp.reshape(v, (1, c)), (1, pack * width))

    # One coalesced [8, L] constant block (rows 5..7 are padding).
    cst = jnp.zeros((8, lanes), jnp.float32)
    cst = cst.at[0].set(tile(p['b_proj'])[0])
    cst = cst.at[1].set(tile(p['bn1_scale'])[0])
    cst = cst.at[2].set(tile(p['bn1_shift'] + p['b1'] * p['bn1_scale'])[0])
    cst = cst.at[3].set(tile(p['bn2_scale'])[0])
    cst = cst.at[4].set(tile(p['bn2_shift'] + p['b2'] * p['bn2_scale'])[0])

    # [2H, H] stacked sub-diagonal shift matrices (exact in f32).
    shift = jnp.concatenate([jnp.eye(height, k=-1, dtype=jnp.float32),
                             jnp.eye(height, k=1, dtype=jnp.float32)], axis=0)

    bf16 = jnp.bfloat16
    return dict(
        wpa=jnp.kron(eye_pw, p['w_proj'][:c]).astype(bf16),          # [L, L]
        wpb=jnp.kron(eye_pw, p['w_proj'][c:]).astype(bf16),          # [L, L]
        w1=_banded_conv_weight(p['w1'], width, c, pack).astype(bf16),  # [L,3L]
        w2=_banded_conv_weight(p['w2'], width, c, pack).astype(bf16),  # [L,3L]
        cst=cst,
        shift=shift,
    )


# ---------------------------------------------------------------------------
# Wrapper
# ---------------------------------------------------------------------------

def concat_block_forward(x_nchw, y_nchw, p):
    """ConcatBlock forward.  Inputs/outputs are NCHW (PyTorch convention)."""
    n, c, h, w = x_nchw.shape
    wc = w * c

    # Pack `pack` images side-by-side along lanes so the lane width reaches
    # 128 (unmasked stores / full MXU lane width); grid runs over the groups.
    pack = math.gcd(n, max(1, 128 // wc))
    groups = n // pack
    lanes = pack * wc

    def to_lane_layout(a_nchw):
        a = jnp.transpose(a_nchw, (0, 2, 3, 1))              # NHWC
        a = a.reshape(groups, pack, h, wc)
        a = jnp.transpose(a, (0, 2, 1, 3))                   # [G, H, P, WC]
        return a.reshape(groups * h, lanes).astype(jnp.bfloat16)

    x2 = to_lane_layout(x_nchw)
    y2 = to_lane_layout(y_nchw)

    prep = _prepare_lane_params(p, w, c, pack, h)
    weights = (prep['wpa'], prep['wpb'], prep['w1'], prep['w2'],
               prep['cst'], prep['shift'])

    act_spec = pl.BlockSpec((h, lanes), lambda i: (i, 0))

    def _const_spec(a):
        nd = a.ndim
        return pl.BlockSpec(a.shape, lambda i, _nd=nd: (0,) * _nd)

    # proj: 2x [H,L]@[L,L]; each conv: [H,L]@[L,3L] + 2x [H,H]@[H,L] shifts.
    flops_group = (2 * 2 * h * lanes * lanes
                   + 2 * (2 * h * lanes * 3 * lanes + 2 * 2 * h * h * lanes))
    bytes_accessed = (x2.size * 2 + y2.size * 2 + groups * h * lanes * 4
                      + sum(a.size * a.dtype.itemsize for a in weights))

    out2 = pl.pallas_call(
        _concat_block_kernel,
        out_shape=jax.ShapeDtypeStruct((groups * h, lanes), jnp.float32),
        grid=(groups,),
        in_specs=[act_spec, act_spec] + [_const_spec(a) for a in weights],
        out_specs=act_spec,
        compiler_params=pltpu.CompilerParams(
            dimension_semantics=("parallel",)),
        cost_estimate=pl.CostEstimate(flops=int(groups * flops_group),
                                      transcendentals=0,
                                      bytes_accessed=int(bytes_accessed)),
    )(x2, y2, *weights)

    out = out2.reshape(groups, h, pack, wc)
    out = jnp.transpose(out, (0, 2, 1, 3)).reshape(n, h, w, c)
    return jnp.transpose(out, (0, 3, 1, 2))                  # back to NCHW


# ---------------------------------------------------------------------------
# Deterministic parameter init (synthetic; shapes follow the nn.Module)
# ---------------------------------------------------------------------------

def init_params(key, dim):
    c = dim
    eps = 1e-5
    ks = jax.random.split(key, 14)

    def bn_fold(kg, kb, km, kv):
        gamma = 1.0 + 0.1 * jax.random.normal(kg, (c,), jnp.float32)
        beta = 0.1 * jax.random.normal(kb, (c,), jnp.float32)
        mean = 0.1 * jax.random.normal(km, (c,), jnp.float32)
        var = jax.random.uniform(kv, (c,), jnp.float32, 0.5, 1.5)
        scale = gamma / jnp.sqrt(var + eps)
        shift = beta - mean * scale
        return scale.reshape(1, c), shift.reshape(1, c)

    p = {
        # proj: Conv2d(2C -> C, 1x1); weight stored as [2C, C] (in, out)
        'w_proj': 0.1 * jax.random.normal(ks[0], (2 * c, c), jnp.float32),
        'b_proj': 0.1 * jax.random.normal(ks[1], (1, c), jnp.float32),
        # conv1 / conv2: Conv2d(C -> C, 3x3, pad 1); weights HWIO [3,3,C,C]
        'w1': 0.1 * jax.random.normal(ks[2], (3, 3, c, c), jnp.float32),
        'b1': 0.1 * jax.random.normal(ks[3], (1, c), jnp.float32),
        'w2': 0.1 * jax.random.normal(ks[4], (3, 3, c, c), jnp.float32),
        'b2': 0.1 * jax.random.normal(ks[5], (1, c), jnp.float32),
    }
    p['bn1_scale'], p['bn1_shift'] = bn_fold(ks[6], ks[7], ks[8], ks[9])
    p['bn2_scale'], p['bn2_shift'] = bn_fold(ks[10], ks[11], ks[12], ks[13])
    return p


# ---------------------------------------------------------------------------
# Pure-JAX reference (correctness check only)
# ---------------------------------------------------------------------------

def reference_forward(x_nchw, y_nchw, p):
    x = jnp.transpose(x_nchw, (0, 2, 3, 1)).astype(jnp.float32)
    y = jnp.transpose(y_nchw, (0, 2, 3, 1)).astype(jnp.float32)
    xy = jnp.concatenate([x, y], axis=-1)
    h0 = jax.nn.relu(jnp.einsum('nhwc,cd->nhwd', xy, p['w_proj'])
                     + p['b_proj'][0])

    def conv3(a, w, b):
        o = jax.lax.conv_general_dilated(
            a, w, (1, 1), 'SAME',
            dimension_numbers=('NHWC', 'HWIO', 'NHWC'))
        return o + b[0]

    h1 = jax.nn.relu(conv3(h0, p['w1'], p['b1']) * p['bn1_scale'][0]
                     + p['bn1_shift'][0])
    h2 = conv3(h1, p['w2'], p['b2']) * p['bn2_scale'][0] + p['bn2_shift'][0]
    out = jax.nn.relu(h0 + h2)
    return jnp.transpose(out, (0, 3, 1, 2))


# ---------------------------------------------------------------------------

if __name__ == "__main__":
    key = jax.random.PRNGKey(0)
    kx, ky, kp = jax.random.split(key, 3)

    N, C, H, W = 2, 4, 16, 16          # NCHW, dim = 4
    x = jax.random.normal(kx, (N, C, H, W), jnp.float32)
    y = jax.random.normal(ky, (N, C, H, W), jnp.float32)
    params = init_params(kp, C)

    fwd = jax.jit(concat_block_forward)
    out = jax.block_until_ready(fwd(x, y, params))

    ref = reference_forward(x, y, params)
    assert out.shape == (N, C, H, W), out.shape
    # bf16 matmul operands with f32 accumulation -> slightly looser tolerance.
    if not jnp.allclose(out, ref, atol=2e-2, rtol=2e-2):
        raise AssertionError("Pallas ConcatBlock output mismatches reference")

    print("KERNEL_OK")
</pallas_src>

<mosaic_0001>
module attributes {stable_mosaic.version = 11 : i64} {
  func.func @_concat_block_kernel(%arg0: i32, %arg1: memref<16x128xbf16, #tpu.memory_space<vmem>>, %arg2: memref<16x128xbf16, #tpu.memory_space<vmem>>, %arg3: memref<128x128xbf16, #tpu.memory_space<vmem>>, %arg4: memref<128x128xbf16, #tpu.memory_space<vmem>>, %arg5: memref<128x384xbf16, #tpu.memory_space<vmem>>, %arg6: memref<128x384xbf16, #tpu.memory_space<vmem>>, %arg7: memref<8x128xf32, #tpu.memory_space<vmem>>, %arg8: memref<32x16xf32, #tpu.memory_space<vmem>>, %arg9: memref<16x128xf32, #tpu.memory_space<vmem>>) attributes {dimension_semantics = [#tpu.dimension_semantics<parallel>], iteration_bounds = array<i64: 1>, scalar_prefetch = 0 : i64, scratch_operands = 0 : i64, tpu.core_type = #tpu.core_type<tc>, window_params = [{transform_indices = @transform_0, window_bounds = array<i64: 16, 128>}, {transform_indices = @transform_1, window_bounds = array<i64: 16, 128>}, {pipeline_mode = #tpu.pipeline_mode<synchronous>, transform_indices = @transform_2, window_bounds = array<i64: 128, 128>}, {pipeline_mode = #tpu.pipeline_mode<synchronous>, transform_indices = @transform_3, window_bounds = array<i64: 128, 128>}, {pipeline_mode = #tpu.pipeline_mode<synchronous>, transform_indices = @transform_4, window_bounds = array<i64: 128, 384>}, {pipeline_mode = #tpu.pipeline_mode<synchronous>, transform_indices = @transform_5, window_bounds = array<i64: 128, 384>}, {pipeline_mode = #tpu.pipeline_mode<synchronous>, transform_indices = @transform_6, window_bounds = array<i64: 8, 128>}, {pipeline_mode = #tpu.pipeline_mode<synchronous>, transform_indices = @transform_7, window_bounds = array<i64: 32, 16>}, {transform_indices = @transform_8, window_bounds = array<i64: 16, 128>}]} {
    %c0 = arith.constant 0 : index
    %c0_0 = arith.constant 0 : index
    %0 = vector.load %arg7[%c0, %c0_0] : memref<8x128xf32, #tpu.memory_space<vmem>>, vector<1x128xf32>
    %c1 = arith.constant 1 : index
    %c0_1 = arith.constant 0 : index
    %1 = vector.load %arg7[%c1, %c0_1] : memref<8x128xf32, #tpu.memory_space<vmem>>, vector<1x128xf32>
    %c2 = arith.constant 2 : index
    %c0_2 = arith.constant 0 : index
    %2 = vector.load %arg7[%c2, %c0_2] : memref<8x128xf32, #tpu.memory_space<vmem>>, vector<1x128xf32>
    %c3 = arith.constant 3 : index
    %c0_3 = arith.constant 0 : index
    %3 = vector.load %arg7[%c3, %c0_3] : memref<8x128xf32, #tpu.memory_space<vmem>>, vector<1x128xf32>
    %c4 = arith.constant 4 : index
    %c0_4 = arith.constant 0 : index
    %4 = vector.load %arg7[%c4, %c0_4] : memref<8x128xf32, #tpu.memory_space<vmem>>, vector<1x128xf32>
    %c0_5 = arith.constant 0 : index
    %c0_6 = arith.constant 0 : index
    %5 = vector.load %arg8[%c0_5, %c0_6] : memref<32x16xf32, #tpu.memory_space<vmem>>, vector<16x16xf32>
    %c16 = arith.constant 16 : index
    %c0_7 = arith.constant 0 : index
    %6 = vector.load %arg8[%c16, %c0_7] : memref<32x16xf32, #tpu.memory_space<vmem>>, vector<16x16xf32>
    %c0_8 = arith.constant 0 : index
    %c0_9 = arith.constant 0 : index
    %7 = vector.load %arg1[%c0_8, %c0_9] : memref<16x128xbf16, #tpu.memory_space<vmem>>, vector<16x128xbf16>
    %c0_10 = arith.constant 0 : index
    %c0_11 = arith.constant 0 : index
    %8 = vector.load %arg3[%c0_10, %c0_11] : memref<128x128xbf16, #tpu.memory_space<vmem>>, vector<128x128xbf16>
    %cst = arith.constant dense<0.000000e+00> : vector<16x128xf32>
    %9 = tpu.matmul %7, %8, %cst {dimension_numbers = #tpu.dot_dimension_numbers<[1], [0], [0], [1], [0, 0, 1, 1], [], []>} : vector<16x128xbf16>, vector<128x128xbf16>, vector<16x128xf32> -> vector<16x128xf32>
    %c0_12 = arith.constant 0 : index
    %c0_13 = arith.constant 0 : index
    %10 = vector.load %arg2[%c0_12, %c0_13] : memref<16x128xbf16, #tpu.memory_space<vmem>>, vector<16x128xbf16>
    %c0_14 = arith.constant 0 : index
    %c0_15 = arith.constant 0 : index
    %11 = vector.load %arg4[%c0_14, %c0_15] : memref<128x128xbf16, #tpu.memory_space<vmem>>, vector<128x128xbf16>
    %cst_16 = arith.constant dense<0.000000e+00> : vector<16x128xf32>
    %12 = tpu.matmul %10, %11, %cst_16 {dimension_numbers = #tpu.dot_dimension_numbers<[1], [0], [0], [1], [0, 0, 1, 1], [], []>} : vector<16x128xbf16>, vector<128x128xbf16>, vector<16x128xf32> -> vector<16x128xf32>
    %13 = arith.addf %9, %12 : vector<16x128xf32>
    %14 = vector.broadcast %0 : vector<1x128xf32> to vector<16x128xf32>
    %15 = arith.addf %13, %14 : vector<16x128xf32>
    %cst_17 = arith.constant 0.000000e+00 : f32
    %16 = vector.broadcast %cst_17 : f32 to vector<16x128xf32>
    %17 = arith.maximumf %15, %16 : vector<16x128xf32>
    %18 = arith.truncf %17 : vector<16x128xf32> to vector<16x128xbf16>
    %c0_18 = arith.constant 0 : index
    %c0_19 = arith.constant 0 : index
    %19 = vector.load %arg5[%c0_18, %c0_19] : memref<128x384xbf16, #tpu.memory_space<vmem>>, vector<128x384xbf16>
    %cst_20 = arith.constant dense<0.000000e+00> : vector<16x384xf32>
    %20 = tpu.matmul %18, %19, %cst_20 {dimension_numbers = #tpu.dot_dimension_numbers<[1], [0], [0], [1], [0, 0, 1, 1], [], []>} : vector<16x128xbf16>, vector<128x384xbf16>, vector<16x384xf32> -> vector<16x384xf32>
    %21 = vector.extract_strided_slice %20 {offsets = [0, 0], sizes = [16, 128], strides = [1, 1]} : vector<16x384xf32> to vector<16x128xf32>
    %22 = vector.extract_strided_slice %20 {offsets = [0, 128], sizes = [16, 128], strides = [1, 1]} : vector<16x384xf32> to vector<16x128xf32>
    %23 = vector.extract_strided_slice %20 {offsets = [0, 256], sizes = [16, 128], strides = [1, 1]} : vector<16x384xf32> to vector<16x128xf32>
    %cst_21 = arith.constant dense<0.000000e+00> : vector<16x128xf32>
    %24 = tpu.matmul %5, %21, %cst_21 {dimension_numbers = #tpu.dot_dimension_numbers<[1], [0], [0], [1], [0, 0, 1, 1], [], []>} : vector<16x16xf32>, vector<16x128xf32>, vector<16x128xf32> -> vector<16x128xf32>
    %25 = arith.addf %22, %24 : vector<16x128xf32>
    %cst_22 = arith.constant dense<0.000000e+00> : vector<16x128xf32>
    %26 = tpu.matmul %6, %23, %cst_22 {dimension_numbers = #tpu.dot_dimension_numbers<[1], [0], [0], [1], [0, 0, 1, 1], [], []>} : vector<16x16xf32>, vector<16x128xf32>, vector<16x128xf32> -> vector<16x128xf32>
    %27 = arith.addf %25, %26 : vector<16x128xf32>
    %28 = vector.broadcast %1 : vector<1x128xf32> to vector<16x128xf32>
    %29 = arith.mulf %27, %28 : vector<16x128xf32>
    %30 = vector.broadcast %2 : vector<1x128xf32> to vector<16x128xf32>
    %31 = arith.addf %29, %30 : vector<16x128xf32>
    %cst_23 = arith.constant 0.000000e+00 : f32
    %32 = vector.broadcast %cst_23 : f32 to vector<16x128xf32>
    %33 = arith.maximumf %31, %32 : vector<16x128xf32>
    %34 = arith.truncf %33 : vector<16x128xf32> to vector<16x128xbf16>
    %c0_24 = arith.constant 0 : index
    %c0_25 = arith.constant 0 : index
    %35 = vector.load %arg6[%c0_24, %c0_25] : memref<128x384xbf16, #tpu.memory_space<vmem>>, vector<128x384xbf16>
    %cst_26 = arith.constant dense<0.000000e+00> : vector<16x384xf32>
    %36 = tpu.matmul %34, %35, %cst_26 {dimension_numbers = #tpu.dot_dimension_numbers<[1], [0], [0], [1], [0, 0, 1, 1], [], []>} : vector<16x128xbf16>, vector<128x384xbf16>, vector<16x384xf32> -> vector<16x384xf32>
    %37 = vector.extract_strided_slice %36 {offsets = [0, 0], sizes = [16, 128], strides = [1, 1]} : vector<16x384xf32> to vector<16x128xf32>
    %38 = vector.extract_strided_slice %36 {offsets = [0, 128], sizes = [16, 128], strides = [1, 1]} : vector<16x384xf32> to vector<16x128xf32>
    %39 = vector.extract_strided_slice %36 {offsets = [0, 256], sizes = [16, 128], strides = [1, 1]} : vector<16x384xf32> to vector<16x128xf32>
    %cst_27 = arith.constant dense<0.000000e+00> : vector<16x128xf32>
    %40 = tpu.matmul %5, %37, %cst_27 {dimension_numbers = #tpu.dot_dimension_numbers<[1], [0], [0], [1], [0, 0, 1, 1], [], []>} : vector<16x16xf32>, vector<16x128xf32>, vector<16x128xf32> -> vector<16x128xf32>
    %41 = arith.addf %38, %40 : vector<16x128xf32>
    %cst_28 = arith.constant dense<0.000000e+00> : vector<16x128xf32>
    %42 = tpu.matmul %6, %39, %cst_28 {dimension_numbers = #tpu.dot_dimension_numbers<[1], [0], [0], [1], [0, 0, 1, 1], [], []>} : vector<16x16xf32>, vector<16x128xf32>, vector<16x128xf32> -> vector<16x128xf32>
    %43 = arith.addf %41, %42 : vector<16x128xf32>
    %44 = vector.broadcast %3 : vector<1x128xf32> to vector<16x128xf32>
    %45 = arith.mulf %43, %44 : vector<16x128xf32>
    %46 = vector.broadcast %4 : vector<1x128xf32> to vector<16x128xf32>
    %47 = arith.addf %45, %46 : vector<16x128xf32>
    %48 = arith.addf %17, %47 : vector<16x128xf32>
    %cst_29 = arith.constant 0.000000e+00 : f32
    %49 = vector.broadcast %cst_29 : f32 to vector<16x128xf32>
    %50 = arith.maximumf %48, %49 : vector<16x128xf32>
    %c0_30 = arith.constant 0 : index
    %c0_31 = arith.constant 0 : index
    %51 = vector.load %arg9[%c0_30, %c0_31] : memref<16x128xf32, #tpu.memory_space<vmem>>, vector<16x128xf32>
    tpu.vector_store %arg9[%c0_30, %c0_31], %50 {strides = array<i32>} : memref<16x128xf32, #tpu.memory_space<vmem>>, vector<16x128xf32>,
    return
  }
  func.func @transform_0(%arg0: i32) -> (i32, i32) {
    %c0_i32 = arith.constant 0 : i32
    %c0_i32_0 = arith.constant 0 : i32
    return %arg0, %c0_i32 : i32, i32
  }
  func.func @transform_1(%arg0: i32) -> (i32, i32) {
    %c0_i32 = arith.constant 0 : i32
    %c0_i32_0 = arith.constant 0 : i32
    return %arg0, %c0_i32 : i32, i32
  }
  func.func @transform_2(%arg0: i32) -> (i32, i32) {
    %c0_i32 = arith.constant 0 : i32
    %c0_i32_0 = arith.constant 0 : i32
    %c0_i32_1 = arith.constant 0 : i32
    return %c0_i32, %c0_i32_0 : i32, i32
  }
  func.func @transform_3(%arg0: i32) -> (i32, i32) {
    %c0_i32 = arith.constant 0 : i32
    %c0_i32_0 = arith.constant 0 : i32
    %c0_i32_1 = arith.constant 0 : i32
    return %c0_i32, %c0_i32_0 : i32, i32
  }
  func.func @transform_4(%arg0: i32) -> (i32, i32) {
    %c0_i32 = arith.constant 0 : i32
    %c0_i32_0 = arith.constant 0 : i32
    %c0_i32_1 = arith.constant 0 : i32
    return %c0_i32, %c0_i32_0 : i32, i32
  }
  func.func @transform_5(%arg0: i32) -> (i32, i32) {
    %c0_i32 = arith.constant 0 : i32
    %c0_i32_0 = arith.constant 0 : i32
    %c0_i32_1 = arith.constant 0 : i32
    return %c0_i32, %c0_i32_0 : i32, i32
  }
  func.func @transform_6(%arg0: i32) -> (i32, i32) {
    %c0_i32 = arith.constant 0 : i32
    %c0_i32_0 = arith.constant 0 : i32
    %c0_i32_1 = arith.constant 0 : i32
    return %c0_i32, %c0_i32_0 : i32, i32
  }
  func.func @transform_7(%arg0: i32) -> (i32, i32) {
    %c0_i32 = arith.constant 0 : i32
    %c0_i32_0 = arith.constant 0 : i32
    %c0_i32_1 = arith.constant 0 : i32
    return %c0_i32, %c0_i32_0 : i32, i32
  }
  func.func @transform_8(%arg0: i32) -> (i32, i32) {
    %c0_i32 = arith.constant 0 : i32
    %c0_i32_0 = arith.constant 0 : i32
    return %arg0, %c0_i32 : i32, i32
  }
}

</mosaic_0001>

<llo_original>
// kernel: concat_block_forward.1
$region0: #{concat_block_forward.1}
  #allocation0 [shape = 'u32[]', space=smem, size = 0x4, offset = 0x4, fixed_abs, tag = 'smem constant byte address 0x4 - core index']
  #allocation1 [shape = 'u32[144,128]{1,0:T(1,128)}', space=vmem, size = 0x12000, scoped, tag = 'internal scratch']
  %s0 = inlined_call_operand.vmem [shape: bf16[16,128], index: 0, kind: input, shape index: {}]
  %s1 = inlined_call_operand.vmem [shape: bf16[16,128], index: 1, kind: input, shape index: {}]
  %s2 = inlined_call_operand.vmem [shape: bf16[128,128], index: 2, kind: input, shape index: {}]
  %s3 = inlined_call_operand.vmem [shape: bf16[128,128], index: 3, kind: input, shape index: {}]
  %s4 = inlined_call_operand.vmem [shape: bf16[128,384], index: 4, kind: input, shape index: {}]
  %s5 = inlined_call_operand.vmem [shape: bf16[128,384], index: 5, kind: input, shape index: {}]
  %s6 = inlined_call_operand.vmem [shape: f32[8,128], index: 6, kind: input, shape index: {}]
  %s7 = inlined_call_operand.vmem [shape: f32[32,16], index: 7, kind: input, shape index: {}]
  %s8 = inlined_call_operand.vmem [shape: f32[16,128], index: 8, kind: output, shape index: {}]
  %s9 = sld [smem:[#allocation0]]
  $region42: #{concat_block_forward.1} parent=0
    _
  %s11 = ssub.s32 1, %s9
  %s12 = scalar_select 0, %s11, %s9
  // Predicated region
  $region2: #{concat_block_forward.1} parent=0 // pred_check
    _
  $region3: #{concat_block_forward.1} parent=0 // pred_check_branch
    %14 = sbr.rel (0) target = $region5
  $region4: #{concat_block_forward.1} parent=0 // pred_region
    _
  $region5: #{concat_block_forward.1} parent=0 // pred_fallthru
    _
  // Predicated region
  $region6: #{concat_block_forward.1} parent=0 // pred_check
    _
  $region7: #{concat_block_forward.1} parent=0 // pred_check_branch
    %16 = sbr.rel (0) target = $region9
  $region8: #{concat_block_forward.1} parent=0 // pred_region
    _
  $region9: #{concat_block_forward.1} parent=0 // pred_fallthru
    _
  // Predicated region
  $region10: #{concat_block_forward.1} parent=0 // pred_check
    _
  $region11: #{concat_block_forward.1} parent=0 // pred_check_branch
    %18 = sbr.rel (0) target = $region13
  $region12: #{concat_block_forward.1} parent=0 // pred_region
    _
  $region13: #{concat_block_forward.1} parent=0 // pred_fallthru
    _
  // Predicated region
  $region14: #{concat_block_forward.1} parent=0 // pred_check
    _
  $region15: #{concat_block_forward.1} parent=0 // pred_check_branch
    %20 = sbr.rel (0) target = $region17
  $region16: #{concat_block_forward.1} parent=0 // pred_region
    _
  $region17: #{concat_block_forward.1} parent=0 // pred_fallthru
    _
  // Predicated region
  $region18: #{concat_block_forward.1} parent=0 // pred_check
    _
  $region19: #{concat_block_forward.1} parent=0 // pred_check_branch
    %22 = sbr.rel (0) target = $region21
  $region20: #{concat_block_forward.1} parent=0 // pred_region
    _
  $region21: #{concat_block_forward.1} parent=0 // pred_fallthru
    _
  // Predicated region
  $region22: #{concat_block_forward.1} parent=0 // pred_check
    _
  $region23: #{concat_block_forward.1} parent=0 // pred_check_branch
    %24 = sbr.rel (0) target = $region25
  $region24: #{concat_block_forward.1} parent=0 // pred_region
    _
  $region25: #{concat_block_forward.1} parent=0 // pred_fallthru
    _
  // Predicated region
  $region26: #{concat_block_forward.1} parent=0 // pred_check
    _
  $region27: #{concat_block_forward.1} parent=0 // pred_check_branch
    %26 = sbr.rel (0) target = $region29
  $region28: #{concat_block_forward.1} parent=0 // pred_region
    _
  $region29: #{concat_block_forward.1} parent=0 // pred_fallthru
    _
  // Predicated region
  $region30: #{concat_block_forward.1} parent=0 // pred_check
    _
  $region31: #{concat_block_forward.1} parent=0 // pred_check_branch
    %28 = sbr.rel (0) target = $region33
  $region32: #{concat_block_forward.1} parent=0 // pred_region
    _
  $region33: #{concat_block_forward.1} parent=0 // pred_fallthru
    _
  %v30 = vld [vmem:[%s6] sm:$0x1]
  %v31 = vld [vmem:[%s6 + $0x1] sm:$0x1]
  %v32 = vld [vmem:[%s6 + $0x2] sm:$0x1]
  %v33 = vld [vmem:[%s6 + $0x3] sm:$0x1]
  %v34 = vld [vmem:[%s6 + $0x4] sm:$0x1]
  %v35 = vld [vmem:[%s7] sm:$0xff]
  %v36 = vld [vmem:[%s7 + $0x8] sm:$0xff]
  %v37 = vld [vmem:[%s7 + $0x10] sm:$0xff]
  %v38 = vld [vmem:[%s7 + $0x18] sm:$0xff]
  %v39 = vld [vmem:[%s0] sm:$0xf]
  %v40 = vld [vmem:[%s0 + $0x4] sm:$0xf]
  %v41 = vld [vmem:[%s2] sm:$0xf]
  %v42 = vld [vmem:[%s2 + $0x4] sm:$0xf]
  %v43 = vld [vmem:[%s2 + $0x8] sm:$0xf]
  %v44 = vld [vmem:[%s2 + $0xc] sm:$0xf]
  %v45 = vld [vmem:[%s2 + $0x10] sm:$0xf]
  %v46 = vld [vmem:[%s2 + $0x14] sm:$0xf]
  %v47 = vld [vmem:[%s2 + $0x18] sm:$0xf]
  %v48 = vld [vmem:[%s2 + $0x1c] sm:$0xf]
  %v49 = vld [vmem:[%s2 + $0x20] sm:$0xf]
  %v50 = vld [vmem:[%s2 + $0x24] sm:$0xf]
  %v51 = vld [vmem:[%s2 + $0x28] sm:$0xf]
  %v52 = vld [vmem:[%s2 + $0x2c] sm:$0xf]
  %v53 = vld [vmem:[%s2 + $0x30] sm:$0xf]
  %v54 = vld [vmem:[%s2 + $0x34] sm:$0xf]
  %v55 = vld [vmem:[%s2 + $0x38] sm:$0xf]
  %v56 = vld [vmem:[%s2 + $0x3c] sm:$0xf]
  %v57 = vld [vmem:[%s1] sm:$0xf]
  %v58 = vld [vmem:[%s1 + $0x4] sm:$0xf]
  %v59 = vld [vmem:[%s3] sm:$0xf]
  %v60 = vld [vmem:[%s3 + $0x4] sm:$0xf]
  %v61 = vld [vmem:[%s3 + $0x8] sm:$0xf]
  %v62 = vld [vmem:[%s3 + $0xc] sm:$0xf]
  %v63 = vld [vmem:[%s3 + $0x10] sm:$0xf]
  %v64 = vld [vmem:[%s3 + $0x14] sm:$0xf]
  %v65 = vld [vmem:[%s3 + $0x18] sm:$0xf]
  %v66 = vld [vmem:[%s3 + $0x1c] sm:$0xf]
  %v67 = vld [vmem:[%s3 + $0x20] sm:$0xf]
  %v68 = vld [vmem:[%s3 + $0x24] sm:$0xf]
  %v69 = vld [vmem:[%s3 + $0x28] sm:$0xf]
  %v70 = vld [vmem:[%s3 + $0x2c] sm:$0xf]
  %v71 = vld [vmem:[%s3 + $0x30] sm:$0xf]
  %v72 = vld [vmem:[%s3 + $0x34] sm:$0xf]
  %v73 = vld [vmem:[%s3 + $0x38] sm:$0xf]
  %v74 = vld [vmem:[%s3 + $0x3c] sm:$0xf]
  %v77 = vunpack.c.l.b16 %v57
  %v78 = vunpack.c.l.b16 %v58
  %v79 = vpack.c.b16 %v78, %v77
  %v97 = vunpack.c.l.b16 %v59
  %v98 = vunpack.c.l.b16 %v60
  %v99 = vunpack.c.l.b16 %v61
  %v100 = vunpack.c.l.b16 %v62
  %v101 = vunpack.c.l.b16 %v63
  %v102 = vunpack.c.l.b16 %v64
  %v103 = vunpack.c.l.b16 %v65
  %v104 = vunpack.c.l.b16 %v66
  %v105 = vunpack.c.l.b16 %v67
  %v106 = vunpack.c.l.b16 %v68
  %v107 = vunpack.c.l.b16 %v69
  %v108 = vunpack.c.l.b16 %v70
  %v109 = vunpack.c.l.b16 %v71
  %v110 = vunpack.c.l.b16 %v72
  %v111 = vunpack.c.l.b16 %v73
  %v112 = vunpack.c.l.b16 %v74
  %v113 = vpack.c.b16 %v98, %v97
  %v114 = vpack.c.b16 %v100, %v99
  %v115 = vpack.c.b16 %v102, %v101
  %v116 = vpack.c.b16 %v104, %v103
  %v117 = vpack.c.b16 %v106, %v105
  %v118 = vpack.c.b16 %v108, %v107
  %v119 = vpack.c.b16 %v110, %v109
  %v120 = vpack.c.b16 %v112, %v111
  %129 = vmatprep.subr.bf16.mxu0 0
  %130 = vmatpush1.bf16.msra.mxu0 %v113
  %131 = vmatprep.subr.bf16.mxu0 0
  %132 = vmatpush1.bf16.msra.mxu0 %v114
  %133 = vmatprep.subr.bf16.mxu0 0
  %134 = vmatpush1.bf16.msra.mxu0 %v115
  %135 = vmatprep.subr.bf16.mxu0 0
  %136 = vmatpush1.bf16.msra.mxu0 %v116
  %137 = vmatprep.subr.bf16.mxu0 0
  %138 = vmatpush1.bf16.msra.mxu0 %v117
  %139 = vmatprep.subr.bf16.mxu0 0
  %140 = vmatpush1.bf16.msra.mxu0 %v118
  %141 = vmatprep.subr.bf16.mxu0 0
  %142 = vmatpush1.bf16.msra.mxu0 %v119
  %143 = vmatprep.subr.bf16.mxu0 0
  %144 = vmatpush1.bf16.msra.mxu0 %v120
  %145 = vmatprep.subr.bf16.mxu0 0
  %146 = vmatpush1.bf16.msra.mxu0 0
  %147 = vmatprep.subr.bf16.mxu0 0
  %148 = vmatpush1.bf16.msra.mxu0 0
  %149 = vmatprep.subr.bf16.mxu0 0
  %150 = vmatpush1.bf16.msra.mxu0 0
  %151 = vmatprep.subr.bf16.mxu0 0
  %152 = vmatpush1.bf16.msra.mxu0 0
  %153 = vmatprep.subr.bf16.mxu0 0
  %154 = vmatpush1.bf16.msra.mxu0 0
  %155 = vmatprep.subr.bf16.mxu0 0
  %156 = vmatpush1.bf16.msra.mxu0 0
  %157 = vmatprep.subr.bf16.mxu0 0
  %158 = vmatpush1.bf16.msra.mxu0 0
  %159 = vmatprep.subr.bf16.mxu0 0
  %160 = vmatpush1.bf16.msra.mxu0 0
  %161 = vmatprep.mubr.bf16.mxu0 0
  %162 = vmatmul.mubr.bf16.gmra.mrb[0].mxu0 %v79
  %v163 = vpop.f32.mrb[0].mxu0
  %v164 = vadd.f32 0.0, %v163
  %v165 = vpop.f32.mrb[0].mxu0
  %v166 = vpop.f32.mrb[0].mxu0
  %v167 = vadd.f32 0.0, %v166
  %v168 = vpop.f32.mrb[0].mxu0
  %169 = vdwg.mxu0
  %v172 = vunpack.c.l.b16 %v39
  %v173 = vunpack.c.l.b16 %v40
  %v174 = vpack.c.b16 %v173, %v172
  %v192 = vunpack.c.l.b16 %v41
  %v193 = vunpack.c.l.b16 %v42
  %v194 = vunpack.c.l.b16 %v43
  %v195 = vunpack.c.l.b16 %v44
  %v196 = vunpack.c.l.b16 %v45
  %v197 = vunpack.c.l.b16 %v46
  %v198 = vunpack.c.l.b16 %v47
  %v199 = vunpack.c.l.b16 %v48
  %v200 = vunpack.c.l.b16 %v49
  %v201 = vunpack.c.l.b16 %v50
  %v202 = vunpack.c.l.b16 %v51
  %v203 = vunpack.c.l.b16 %v52
  %v204 = vunpack.c.l.b16 %v53
  %v205 = vunpack.c.l.b16 %v54
  %v206 = vunpack.c.l.b16 %v55
  %v207 = vunpack.c.l.b16 %v56
  %v208 = vpack.c.b16 %v193, %v192
  %v209 = vpack.c.b16 %v195, %v194
  %v210 = vpack.c.b16 %v197, %v196
  %v211 = vpack.c.b16 %v199, %v198
  %v212 = vpack.c.b16 %v201, %v200
  %v213 = vpack.c.b16 %v203, %v202
  %v214 = vpack.c.b16 %v205, %v204
  %v215 = vpack.c.b16 %v207, %v206
  %224 = vmatprep.subr.bf16.mxu0 0
  %225 = vmatpush1.bf16.msra.mxu0 %v208
  %226 = vmatprep.subr.bf16.mxu0 0
  %227 = vmatpush1.bf16.msra.mxu0 %v209
  %228 = vmatprep.subr.bf16.mxu0 0
  %229 = vmatpush1.bf16.msra.mxu0 %v210
  %230 = vmatprep.subr.bf16.mxu0 0
  %231 = vmatpush1.bf16.msra.mxu0 %v211
  %232 = vmatprep.subr.bf16.mxu0 0
  %233 = vmatpush1.bf16.msra.mxu0 %v212
  %234 = vmatprep.subr.bf16.mxu0 0
  %235 = vmatpush1.bf16.msra.mxu0 %v213
  %236 = vmatprep.subr.bf16.mxu0 0
  %237 = vmatpush1.bf16.msra.mxu0 %v214
  %238 = vmatprep.subr.bf16.mxu0 0
  %239 = vmatpush1.bf16.msra.mxu0 %v215
  %240 = vmatprep.subr.bf16.mxu0 0
  %241 = vmatpush1.bf16.msra.mxu0 0
  %242 = vmatprep.subr.bf16.mxu0 0
  %243 = vmatpush1.bf16.msra.mxu0 0
  %244 = vmatprep.subr.bf16.mxu0 0
  %245 = vmatpush1.bf16.msra.mxu0 0
  %246 = vmatprep.subr.bf16.mxu0 0
  %247 = vmatpush1.bf16.msra.mxu0 0
  %248 = vmatprep.subr.bf16.mxu0 0
  %249 = vmatpush1.bf16.msra.mxu0 0
  %250 = vmatprep.subr.bf16.mxu0 0
  %251 = vmatpush1.bf16.msra.mxu0 0
  %252 = vmatprep.subr.bf16.mxu0 0
  %253 = vmatpush1.bf16.msra.mxu0 0
  %254 = vmatprep.subr.bf16.mxu0 0
  %255 = vmatpush1.bf16.msra.mxu0 0
  %256 = vmatprep.mubr.bf16.mxu0 0
  %257 = vmatmul.mubr.bf16.gmra.mrb[0].mxu0 %v174
  %v258 = vpop.f32.mrb[0].mxu0
  %v259 = vadd.f32 %v164, %v258
  %v260 = vpop.f32.mrb[0].mxu0
  %v261 = vpop.f32.mrb[0].mxu0
  %v262 = vadd.f32 %v167, %v261
  %v263 = vpop.f32.mrb[0].mxu0
  %264 = vdwg.mxu0
  %v265 = vlaneseq
  %v266 = vshrl.u32 %v265, 7
  %v267 = vsub.s32 0, %v266
  %v268 = vrot.slane %v30, %v267
  %v269 = vadd.f32 %v259, %v268
  %v270 = vadd.f32 %v262, %v268
  %v271 = vmax.f32 %v269, 0.0
  %v272 = vmax.f32 %v270, 0.0
  %v273 = vpack.c.bf16 %v272, %v271
  %v274 = vld [vmem:[%s4] sm:$0xff]
  %v275 = vld [vmem:[%s4 + $0x8] sm:$0xf]
  %v276 = vld [vmem:[%s4 + $0xc] sm:$0xff]
  %v277 = vld [vmem:[%s4 + $0x14] sm:$0xf]
  %v278 = vld [vmem:[%s4 + $0x18] sm:$0xff]
  %v279 = vld [vmem:[%s4 + $0x20] sm:$0xf]
  %v280 = vld [vmem:[%s4 + $0x24] sm:$0xff]
  %v281 = vld [vmem:[%s4 + $0x2c] sm:$0xf]
  %v282 = vld [vmem:[%s4 + $0x30] sm:$0xff]
  %v283 = vld [vmem:[%s4 + $0x38] sm:$0xf]
  %v284 = vld [vmem:[%s4 + $0x3c] sm:$0xff]
  %v285 = vld [vmem:[%s4 + $0x44] sm:$0xf]
  %v286 = vld [vmem:[%s4 + $0x48] sm:$0xff]
  %v287 = vld [vmem:[%s4 + $0x50] sm:$0xf]
  %v288 = vld [vmem:[%s4 + $0x54] sm:$0xff]
  %v289 = vld [vmem:[%s4 + $0x5c] sm:$0xf]
  %v290 = vld [vmem:[%s4 + $0x60] sm:$0xff]
  %v291 = vld [vmem:[%s4 + $0x68] sm:$0xf]
  %v292 = vld [vmem:[%s4 + $0x6c] sm:$0xff]
  %v293 = vld [vmem:[%s4 + $0x74] sm:$0xf]
  %v294 = vld [vmem:[%s4 + $0x78] sm:$0xff]
  %v295 = vld [vmem:[%s4 + $0x80] sm:$0xf]
  %v296 = vld [vmem:[%s4 + $0x84] sm:$0xff]
  %v297 = vld [vmem:[%s4 + $0x8c] sm:$0xf]
  %v298 = vld [vmem:[%s4 + $0x90] sm:$0xff]
  %v299 = vld [vmem:[%s4 + $0x98] sm:$0xf]
  %v300 = vld [vmem:[%s4 + $0x9c] sm:$0xff]
  %v301 = vld [vmem:[%s4 + $0xa4] sm:$0xf]
  %v302 = vld [vmem:[%s4 + $0xa8] sm:$0xff]
  %v303 = vld [vmem:[%s4 + $0xb0] sm:$0xf]
  %v304 = vld [vmem:[%s4 + $0xb4] sm:$0xff]
  %v305 = vld [vmem:[%s4 + $0xbc] sm:$0xf]
  %v338 = vunpack.c.l.b16 %v274
  %v339 = vunpack.c.h.b16 %v274
  %v340 = vunpack.c.l.b16 %v275
  %v341 = vunpack.c.l.b16 %v276
  %v342 = vunpack.c.h.b16 %v276
  %v343 = vunpack.c.l.b16 %v277
  %v344 = vunpack.c.l.b16 %v278
  %v345 = vunpack.c.h.b16 %v278
  %v346 = vunpack.c.l.b16 %v279
  %v347 = vunpack.c.l.b16 %v280
  %v348 = vunpack.c.h.b16 %v280
  %v349 = vunpack.c.l.b16 %v281
  %v350 = vunpack.c.l.b16 %v282
  %v351 = vunpack.c.h.b16 %v282
  %v352 = vunpack.c.l.b16 %v283
  %v353 = vunpack.c.l.b16 %v284
  %v354 = vunpack.c.h.b16 %v284
  %v355 = vunpack.c.l.b16 %v285
  %v356 = vunpack.c.l.b16 %v286
  %v357 = vunpack.c.h.b16 %v286
  %v358 = vunpack.c.l.b16 %v287
  %v359 = vunpack.c.l.b16 %v288
  %v360 = vunpack.c.h.b16 %v288
  %v361 = vunpack.c.l.b16 %v289
  %v362 = vunpack.c.l.b16 %v290
  %v363 = vunpack.c.h.b16 %v290
  %v364 = vunpack.c.l.b16 %v291
  %v365 = vunpack.c.l.b16 %v292
  %v366 = vunpack.c.h.b16 %v292
  %v367 = vunpack.c.l.b16 %v293
  %v368 = vunpack.c.l.b16 %v294
  %v369 = vunpack.c.h.b16 %v294
  %v370 = vunpack.c.l.b16 %v295
  %v371 = vunpack.c.l.b16 %v296
  %v372 = vunpack.c.h.b16 %v296
  %v373 = vunpack.c.l.b16 %v297
  %v374 = vunpack.c.l.b16 %v298
  %v375 = vunpack.c.h.b16 %v298
  %v376 = vunpack.c.l.b16 %v299
  %v377 = vunpack.c.l.b16 %v300
  %v378 = vunpack.c.h.b16 %v300
  %v379 = vunpack.c.l.b16 %v301
  %v380 = vunpack.c.l.b16 %v302
  %v381 = vunpack.c.h.b16 %v302
  %v382 = vunpack.c.l.b16 %v303
  %v383 = vunpack.c.l.b16 %v304
  %v384 = vunpack.c.h.b16 %v304
  %v385 = vunpack.c.l.b16 %v305
  %v386 = vpack.c.b16 %v341, %v338
  %v387 = vpack.c.b16 %v342, %v339
  %v388 = vpack.c.b16 %v343, %v340
  %v389 = vpack.c.b16 %v347, %v344
  %v390 = vpack.c.b16 %v348, %v345
  %v391 = vpack.c.b16 %v349, %v346
  %v392 = vpack.c.b16 %v353, %v350
  %v393 = vpack.c.b16 %v354, %v351
  %v394 = vpack.c.b16 %v355, %v352
  %v395 = vpack.c.b16 %v359, %v356
  %v396 = vpack.c.b16 %v360, %v357
  %v397 = vpack.c.b16 %v361, %v358
  %v398 = vpack.c.b16 %v365, %v362
  %v399 = vpack.c.b16 %v366, %v363
  %v400 = vpack.c.b16 %v367, %v364
  %v401 = vpack.c.b16 %v371, %v368
  %v402 = vpack.c.b16 %v372, %v369
  %v403 = vpack.c.b16 %v373, %v370
  %v404 = vpack.c.b16 %v377, %v374
  %v405 = vpack.c.b16 %v378, %v375
  %v406 = vpack.c.b16 %v379, %v376
  %v407 = vpack.c.b16 %v383, %v380
  %v408 = vpack.c.b16 %v384, %v381
  %v409 = vpack.c.b16 %v385, %v382
  %434 = vmatprep.subr.bf16.mxu0 %v387
  %435 = vmatpush1.bf16.msra.mxu0 %v386
  %436 = vmatprep.subr.bf16.mxu0 %v390
  %437 = vmatpush1.bf16.msra.mxu0 %v389
  %438 = vmatprep.subr.bf16.mxu0 %v393
  %439 = vmatpush1.bf16.msra.mxu0 %v392
  %440 = vmatprep.subr.bf16.mxu0 %v396
  %441 = vmatpush1.bf16.msra.mxu0 %v395
  %442 = vmatprep.subr.bf16.mxu0 %v399
  %443 = vmatpush1.bf16.msra.mxu0 %v398
  %444 = vmatprep.subr.bf16.mxu0 %v402
  %445 = vmatpush1.bf16.msra.mxu0 %v401
  %446 = vmatprep.subr.bf16.mxu0 %v405
  %447 = vmatpush1.bf16.msra.mxu0 %v404
  %448 = vmatprep.subr.bf16.mxu0 %v408
  %449 = vmatpush1.bf16.msra.mxu0 %v407
  %450 = vmatprep.subr.bf16.mxu0 0
  %451 = vmatpush1.bf16.msra.mxu0 0
  %452 = vmatprep.subr.bf16.mxu0 0
  %453 = vmatpush1.bf16.msra.mxu0 0
  %454 = vmatprep.subr.bf16.mxu0 0
  %455 = vmatpush1.bf16.msra.mxu0 0
  %456 = vmatprep.subr.bf16.mxu0 0
  %457 = vmatpush1.bf16.msra.mxu0 0
  %458 = vmatprep.subr.bf16.mxu0 0
  %459 = vmatpush1.bf16.msra.mxu0 0
  %460 = vmatprep.subr.bf16.mxu0 0
  %461 = vmatpush1.bf16.msra.mxu0 0
  %462 = vmatprep.subr.bf16.mxu0 0
  %463 = vmatpush1.bf16.msra.mxu0 0
  %464 = vmatprep.subr.bf16.mxu0 0
  %465 = vmatpush1.bf16.msra.mxu0 0
  %466 = vmatprep.mubr.bf16.mxu0 0
  %467 = vmatmul.mubr.bf16.gmra.mrb[0].mxu0 %v273
  %v468 = vpop.f32.mrb[0].mxu0
  %v469 = vadd.f32 0.0, %v468
  %v470 = vpop.f32.mrb[0].mxu0
  %v471 = vadd.f32 0.0, %v470
  %v472 = vpop.f32.mrb[0].mxu0
  %v473 = vadd.f32 0.0, %v472
  %v474 = vpop.f32.mrb[0].mxu0
  %v475 = vadd.f32 0.0, %v474
  %476 = vdwg.mxu0
  %477 = vmatprep.subr.bf16.mxu0 0
  %478 = vmatpush1.bf16.msra.mxu0 %v388
  %479 = vmatprep.subr.bf16.mxu0 0
  %480 = vmatpush1.bf16.msra.mxu0 %v391
  %481 = vmatprep.subr.bf16.mxu0 0
  %482 = vmatpush1.bf16.msra.mxu0 %v394
  %483 = vmatprep.subr.bf16.mxu0 0
  %484 = vmatpush1.bf16.msra.mxu0 %v397
  %485 = vmatprep.subr.bf16.mxu0 0
  %486 = vmatpush1.bf16.msra.mxu0 %v400
  %487 = vmatprep.subr.bf16.mxu0 0
  %488 = vmatpush1.bf16.msra.mxu0 %v403
  %489 = vmatprep.subr.bf16.mxu0 0
  %490 = vmatpush1.bf16.msra.mxu0 %v406
  %491 = vmatprep.subr.bf16.mxu0 0
  %492 = vmatpush1.bf16.msra.mxu0 %v409
  %493 = vmatprep.subr.bf16.mxu0 0
  %494 = vmatpush1.bf16.msra.mxu0 0
  %495 = vmatprep.subr.bf16.mxu0 0
  %496 = vmatpush1.bf16.msra.mxu0 0
  %497 = vmatprep.subr.bf16.mxu0 0
  %498 = vmatpush1.bf16.msra.mxu0 0
  %499 = vmatprep.subr.bf16.mxu0 0
  %500 = vmatpush1.bf16.msra.mxu0 0
  %501 = vmatprep.subr.bf16.mxu0 0
  %502 = vmatpush1.bf16.msra.mxu0 0
  %503 = vmatprep.subr.bf16.mxu0 0
  %504 = vmatpush1.bf16.msra.mxu0 0
  %505 = vmatprep.subr.bf16.mxu0 0
  %506 = vmatpush1.bf16.msra.mxu0 0
  %507 = vmatprep.subr.bf16.mxu0 0
  %508 = vmatpush1.bf16.msra.mxu0 0
  %509 = vmatprep.mubr.bf16.mxu0 0
  %510 = vmatmul.mubr.bf16.gmra.mrb[0].mxu0 %v273
  %v511 = vpop.f32.mrb[0].mxu0
  %v512 = vadd.f32 0.0, %v511
  %v513 = vpop.f32.mrb[0].mxu0
  %v514 = vpop.f32.mrb[0].mxu0
  %v515 = vadd.f32 0.0, %v514
  %v516 = vpop.f32.mrb[0].mxu0
  %517 = vdwg.mxu0
  %vm518 = vcmask 130048
  %v520 = vsel %vm518, %v35, 0
  %v523 = vsel %vm518, %v36, 0
  %525 = vmatprep.subr.mxu0 0.0
  %526 = vmatpush1.msra.mxu0 %v469
  %527 = vmatprep.subr.mxu0 0.0
  %528 = vmatpush1.msra.mxu0 %v473
  %529 = vmatprep.subr.mxu0 0.0
  %530 = vmatpush1.msra.mxu0 0.0
  %531 = vmatprep.subr.mxu0 0.0
  %532 = vmatpush1.msra.mxu0 0.0
  %533 = vmatprep.subr.mxu0 0.0
  %534 = vmatpush1.msra.mxu0 0.0
  %535 = vmatprep.subr.mxu0 0.0
  %536 = vmatpush1.msra.mxu0 0.0
  %537 = vmatprep.subr.mxu0 0.0
  %538 = vmatpush1.msra.mxu0 0.0
  %539 = vmatprep.subr.mxu0 0.0
  %540 = vmatpush1.msra.mxu0 0.0
  %541 = vmatprep.subr.mxu0 0.0
  %542 = vmatpush1.msra.mxu0 0.0
  %543 = vmatprep.subr.mxu0 0.0
  %544 = vmatpush1.msra.mxu0 0.0
  %545 = vmatprep.subr.mxu0 0.0
  %546 = vmatpush1.msra.mxu0 0.0
  %547 = vmatprep.subr.mxu0 0.0
  %548 = vmatpush1.msra.mxu0 0.0
  %549 = vmatprep.subr.mxu0 0.0
  %550 = vmatpush1.msra.mxu0 0.0
  %551 = vmatprep.subr.mxu0 0.0
  %552 = vmatpush1.msra.mxu0 0.0
  %553 = vmatprep.subr.mxu0 0.0
  %554 = vmatpush1.msra.mxu0 0.0
  %555 = vmatprep.subr.mxu0 0.0
  %556 = vmatpush1.msra.mxu0 0.0
  %557 = vmatprep.subr.mxu0 0.0
  %558 = vmatpush1.msra.mxu0 0.0
  %559 = vmatprep.subr.mxu0 0.0
  %560 = vmatpush1.msra.mxu0 0.0
  %561 = vmatprep.subr.mxu0 0.0
  %562 = vmatpush1.msra.mxu0 0.0
  %563 = vmatprep.subr.mxu0 0.0
  %564 = vmatpush1.msra.mxu0 0.0
  %565 = vmatprep.subr.mxu0 0.0
  %566 = vmatpush1.msra.mxu0 0.0
  %567 = vmatprep.subr.mxu0 0.0
  %568 = vmatpush1.msra.mxu0 0.0
  %569 = vmatprep.subr.mxu0 0.0
  %570 = vmatpush1.msra.mxu0 0.0
  %571 = vmatprep.subr.mxu0 0.0
  %572 = vmatpush1.msra.mxu0 0.0
  %573 = vmatprep.subr.mxu0 0.0
  %574 = vmatpush1.msra.mxu0 0.0
  %575 = vmatprep.subr.mxu0 0.0
  %576 = vmatpush1.msra.mxu0 0.0
  %577 = vmatprep.subr.mxu0 0.0
  %578 = vmatpush1.msra.mxu0 0.0
  %579 = vmatprep.subr.mxu0 0.0
  %580 = vmatpush1.msra.mxu0 0.0
  %581 = vmatprep.subr.mxu0 0.0
  %582 = vmatpush1.msra.mxu0 0.0
  %583 = vmatprep.subr.mxu0 0.0
  %584 = vmatpush1.msra.mxu0 0.0
  %585 = vmatprep.subr.mxu0 0.0
  %586 = vmatpush1.msra.mxu0 0.0
  %587 = vmatprep.subr.mxu0 0.0
  %588 = vmatpush1.msra.mxu0 0.0
  %589 = vmatprep.mubr.f32.mxu0 0.0
  %590 = vmatmul.mubr.f32.gmra.mrb[0].mxu0 %v520
  %v591 = vpop.f32.mrb[0].mxu0
  %v592 = vadd.f32 0.0, %v591
  %v593 = vpop.f32.mrb[0].mxu0
  %594 = vmatprep.mubr.f32.mxu0 0.0
  %595 = vmatmul.mubr.f32.gmra.mrb[0].mxu0 %v523
  %v596 = vpop.f32.mrb[0].mxu0
  %v597 = vadd.f32 0.0, %v596
  %v598 = vpop.f32.mrb[0].mxu0
  %599 = vdwg.mxu0
  %v600 = vadd.f32 %v471, %v592
  %v601 = vadd.f32 %v475, %v597
  %v603 = vsel %vm518, %v37, 0
  %v606 = vsel %vm518, %v38, 0
  %608 = vmatprep.subr.mxu0 0.0
  %609 = vmatpush1.msra.mxu0 %v512
  %610 = vmatprep.subr.mxu0 0.0
  %611 = vmatpush1.msra.mxu0 %v515
  %612 = vmatprep.subr.mxu0 0.0
  %613 = vmatpush1.msra.mxu0 0.0
  %614 = vmatprep.subr.mxu0 0.0
  %615 = vmatpush1.msra.mxu0 0.0
  %616 = vmatprep.subr.mxu0 0.0
  %617 = vmatpush1.msra.mxu0 0.0
  %618 = vmatprep.subr.mxu0 0.0
  %619 = vmatpush1.msra.mxu0 0.0
  %620 = vmatprep.subr.mxu0 0.0
  %621 = vmatpush1.msra.mxu0 0.0
  %622 = vmatprep.subr.mxu0 0.0
  %623 = vmatpush1.msra.mxu0 0.0
  %624 = vmatprep.subr.mxu0 0.0
  %625 = vmatpush1.msra.mxu0 0.0
  %626 = vmatprep.subr.mxu0 0.0
  %627 = vmatpush1.msra.mxu0 0.0
  %628 = vmatprep.subr.mxu0 0.0
  %629 = vmatpush1.msra.mxu0 0.0
  %630 = vmatprep.subr.mxu0 0.0
  %631 = vmatpush1.msra.mxu0 0.0
  %632 = vmatprep.subr.mxu0 0.0
  %633 = vmatpush1.msra.mxu0 0.0
  %634 = vmatprep.subr.mxu0 0.0
  %635 = vmatpush1.msra.mxu0 0.0
  %636 = vmatprep.subr.mxu0 0.0
  %637 = vmatpush1.msra.mxu0 0.0
  %638 = vmatprep.subr.mxu0 0.0
  %639 = vmatpush1.msra.mxu0 0.0
  %640 = vmatprep.subr.mxu0 0.0
  %641 = vmatpush1.msra.mxu0 0.0
  %642 = vmatprep.subr.mxu0 0.0
  %643 = vmatpush1.msra.mxu0 0.0
  %644 = vmatprep.subr.mxu0 0.0
  %645 = vmatpush1.msra.mxu0 0.0
  %646 = vmatprep.subr.mxu0 0.0
  %647 = vmatpush1.msra.mxu0 0.0
  %648 = vmatprep.subr.mxu0 0.0
  %649 = vmatpush1.msra.mxu0 0.0
  %650 = vmatprep.subr.mxu0 0.0
  %651 = vmatpush1.msra.mxu0 0.0
  %652 = vmatprep.subr.mxu0 0.0
  %653 = vmatpush1.msra.mxu0 0.0
  %654 = vmatprep.subr.mxu0 0.0
  %655 = vmatpush1.msra.mxu0 0.0
  %656 = vmatprep.subr.mxu0 0.0
  %657 = vmatpush1.msra.mxu0 0.0
  %658 = vmatprep.subr.mxu0 0.0
  %659 = vmatpush1.msra.mxu0 0.0
  %660 = vmatprep.subr.mxu0 0.0
  %661 = vmatpush1.msra.mxu0 0.0
  %662 = vmatprep.subr.mxu0 0.0
  %663 = vmatpush1.msra.mxu0 0.0
  %664 = vmatprep.subr.mxu0 0.0
  %665 = vmatpush1.msra.mxu0 0.0
  %666 = vmatprep.subr.mxu0 0.0
  %667 = vmatpush1.msra.mxu0 0.0
  %668 = vmatprep.subr.mxu0 0.0
  %669 = vmatpush1.msra.mxu0 0.0
  %670 = vmatprep.subr.mxu0 0.0
  %671 = vmatpush1.msra.mxu0 0.0
  %672 = vmatprep.mubr.f32.mxu0 0.0
  %673 = vmatmul.mubr.f32.gmra.mrb[0].mxu0 %v603
  %v674 = vpop.f32.mrb[0].mxu0
  %v675 = vadd.f32 0.0, %v674
  %v676 = vpop.f32.mrb[0].mxu0
  %677 = vmatprep.mubr.f32.mxu0 0.0
  %678 = vmatmul.mubr.f32.gmra.mrb[0].mxu0 %v606
  %v679 = vpop.f32.mrb[0].mxu0
  %v680 = vadd.f32 0.0, %v679
  %v681 = vpop.f32.mrb[0].mxu0
  %682 = vdwg.mxu0
  %v683 = vadd.f32 %v600, %v675
  %v684 = vadd.f32 %v601, %v680
  %v685 = vlaneseq
  %v686 = vshrl.u32 %v685, 7
  %v687 = vsub.s32 0, %v686
  %v688 = vrot.slane %v31, %v687
  %v689 = vmul.f32 %v683, %v688
  %v690 = vmul.f32 %v684, %v688
  %v691 = vlaneseq
  %v692 = vshrl.u32 %v691, 7
  %v693 = vsub.s32 0, %v692
  %v694 = vrot.slane %v32, %v693
  %v695 = vadd.f32 %v689, %v694
  %v696 = vadd.f32 %v690, %v694
  %v697 = vmax.f32 %v695, 0.0
  %v698 = vmax.f32 %v696, 0.0
  %v699 = vpack.c.bf16 %v698, %v697
  %v700 = vld [vmem:[%s5] sm:$0xff]
  %v701 = vld [vmem:[%s5 + $0x8] sm:$0xf]
  %v702 = vld [vmem:[%s5 + $0xc] sm:$0xff]
  %v703 = vld [vmem:[%s5 + $0x14] sm:$0xf]
  %v704 = vld [vmem:[%s5 + $0x18] sm:$0xff]
  %v705 = vld [vmem:[%s5 + $0x20] sm:$0xf]
  %v706 = vld [vmem:[%s5 + $0x24] sm:$0xff]
  %v707 = vld [vmem:[%s5 + $0x2c] sm:$0xf]
  %v708 = vld [vmem:[%s5 + $0x30] sm:$0xff]
  %v709 = vld [vmem:[%s5 + $0x38] sm:$0xf]
  %v710 = vld [vmem:[%s5 + $0x3c] sm:$0xff]
  %v711 = vld [vmem:[%s5 + $0x44] sm:$0xf]
  %v712 = vld [vmem:[%s5 + $0x48] sm:$0xff]
  %v713 = vld [vmem:[%s5 + $0x50] sm:$0xf]
  %v714 = vld [vmem:[%s5 + $0x54] sm:$0xff]
  %v715 = vld [vmem:[%s5 + $0x5c] sm:$0xf]
  %v716 = vld [vmem:[%s5 + $0x60] sm:$0xff]
  %v717 = vld [vmem:[%s5 + $0x68] sm:$0xf]
  %v718 = vld [vmem:[%s5 + $0x6c] sm:$0xff]
  %v719 = vld [vmem:[%s5 + $0x74] sm:$0xf]
  %v720 = vld [vmem:[%s5 + $0x78] sm:$0xff]
  %v721 = vld [vmem:[%s5 + $0x80] sm:$0xf]
  %v722 = vld [vmem:[%s5 + $0x84] sm:$0xff]
  %v723 = vld [vmem:[%s5 + $0x8c] sm:$0xf]
  %v724 = vld [vmem:[%s5 + $0x90] sm:$0xff]
  %v725 = vld [vmem:[%s5 + $0x98] sm:$0xf]
  %v726 = vld [vmem:[%s5 + $0x9c] sm:$0xff]
  %v727 = vld [vmem:[%s5 + $0xa4] sm:$0xf]
  %v728 = vld [vmem:[%s5 + $0xa8] sm:$0xff]
  %v729 = vld [vmem:[%s5 + $0xb0] sm:$0xf]
  %v730 = vld [vmem:[%s5 + $0xb4] sm:$0xff]
  %v731 = vld [vmem:[%s5 + $0xbc] sm:$0xf]
  %v764 = vunpack.c.l.b16 %v700
  %v765 = vunpack.c.h.b16 %v700
  %v766 = vunpack.c.l.b16 %v701
  %v767 = vunpack.c.l.b16 %v702
  %v768 = vunpack.c.h.b16 %v702
  %v769 = vunpack.c.l.b16 %v703
  %v770 = vunpack.c.l.b16 %v704
  %v771 = vunpack.c.h.b16 %v704
  %v772 = vunpack.c.l.b16 %v705
  %v773 = vunpack.c.l.b16 %v706
  %v774 = vunpack.c.h.b16 %v706
  %v775 = vunpack.c.l.b16 %v707
  %v776 = vunpack.c.l.b16 %v708
  %v777 = vunpack.c.h.b16 %v708
  %v778 = vunpack.c.l.b16 %v709
  %v779 = vunpack.c.l.b16 %v710
  %v780 = vunpack.c.h.b16 %v710
  %v781 = vunpack.c.l.b16 %v711
  %v782 = vunpack.c.l.b16 %v712
  %v783 = vunpack.c.h.b16 %v712
  %v784 = vunpack.c.l.b16 %v713
  %v785 = vunpack.c.l.b16 %v714
  %v786 = vunpack.c.h.b16 %v714
  %v787 = vunpack.c.l.b16 %v715
  %v788 = vunpack.c.l.b16 %v716
  %v789 = vunpack.c.h.b16 %v716
  %v790 = vunpack.c.l.b16 %v717
  %v791 = vunpack.c.l.b16 %v718
  %v792 = vunpack.c.h.b16 %v718
  %v793 = vunpack.c.l.b16 %v719
  %v794 = vunpack.c.l.b16 %v720
  %v795 = vunpack.c.h.b16 %v720
  %v796 = vunpack.c.l.b16 %v721
  %v797 = vunpack.c.l.b16 %v722
  %v798 = vunpack.c.h.b16 %v722
  %v799 = vunpack.c.l.b16 %v723
  %v800 = vunpack.c.l.b16 %v724
  %v801 = vunpack.c.h.b16 %v724
  %v802 = vunpack.c.l.b16 %v725
  %v803 = vunpack.c.l.b16 %v726
  %v804 = vunpack.c.h.b16 %v726
  %v805 = vunpack.c.l.b16 %v727
  %v806 = vunpack.c.l.b16 %v728
  %v807 = vunpack.c.h.b16 %v728
  %v808 = vunpack.c.l.b16 %v729
  %v809 = vunpack.c.l.b16 %v730
  %v810 = vunpack.c.h.b16 %v730
  %v811 = vunpack.c.l.b16 %v731
  %v812 = vpack.c.b16 %v767, %v764
  %v813 = vpack.c.b16 %v768, %v765
  %v814 = vpack.c.b16 %v769, %v766
  %v815 = vpack.c.b16 %v773, %v770
  %v816 = vpack.c.b16 %v774, %v771
  %v817 = vpack.c.b16 %v775, %v772
  %v818 = vpack.c.b16 %v779, %v776
  %v819 = vpack.c.b16 %v780, %v777
  %v820 = vpack.c.b16 %v781, %v778
  %v821 = vpack.c.b16 %v785, %v782
  %v822 = vpack.c.b16 %v786, %v783
  %v823 = vpack.c.b16 %v787, %v784
  %v824 = vpack.c.b16 %v791, %v788
  %v825 = vpack.c.b16 %v792, %v789
  %v826 = vpack.c.b16 %v793, %v790
  %v827 = vpack.c.b16 %v797, %v794
  %v828 = vpack.c.b16 %v798, %v795
  %v829 = vpack.c.b16 %v799, %v796
  %v830 = vpack.c.b16 %v803, %v800
  %v831 = vpack.c.b16 %v804, %v801
  %v832 = vpack.c.b16 %v805, %v802
  %v833 = vpack.c.b16 %v809, %v806
  %v834 = vpack.c.b16 %v810, %v807
  %v835 = vpack.c.b16 %v811, %v808
  %860 = vmatprep.subr.bf16.mxu0 %v813
  %861 = vmatpush1.bf16.msra.mxu0 %v812
  %862 = vmatprep.subr.bf16.mxu0 %v816
  %863 = vmatpush1.bf16.msra.mxu0 %v815
  %864 = vmatprep.subr.bf16.mxu0 %v819
  %865 = vmatpush1.bf16.msra.mxu0 %v818
  %866 = vmatprep.subr.bf16.mxu0 %v822
  %867 = vmatpush1.bf16.msra.mxu0 %v821
  %868 = vmatprep.subr.bf16.mxu0 %v825
  %869 = vmatpush1.bf16.msra.mxu0 %v824
  %870 = vmatprep.subr.bf16.mxu0 %v828
  %871 = vmatpush1.bf16.msra.mxu0 %v827
  %872 = vmatprep.subr.bf16.mxu0 %v831
  %873 = vmatpush1.bf16.msra.mxu0 %v830
  %874 = vmatprep.subr.bf16.mxu0 %v834
  %875 = vmatpush1.bf16.msra.mxu0 %v833
  %876 = vmatprep.subr.bf16.mxu0 0
  %877 = vmatpush1.bf16.msra.mxu0 0
  %878 = vmatprep.subr.bf16.mxu0 0
  %879 = vmatpush1.bf16.msra.mxu0 0
  %880 = vmatprep.subr.bf16.mxu0 0
  %881 = vmatpush1.bf16.msra.mxu0 0
  %882 = vmatprep.subr.bf16.mxu0 0
  %883 = vmatpush1.bf16.msra.mxu0 0
  %884 = vmatprep.subr.bf16.mxu0 0
  %885 = vmatpush1.bf16.msra.mxu0 0
  %886 = vmatprep.subr.bf16.mxu0 0
  %887 = vmatpush1.bf16.msra.mxu0 0
  %888 = vmatprep.subr.bf16.mxu0 0
  %889 = vmatpush1.bf16.msra.mxu0 0
  %890 = vmatprep.subr.bf16.mxu0 0
  %891 = vmatpush1.bf16.msra.mxu0 0
  %892 = vmatprep.mubr.bf16.mxu0 0
  %893 = vmatmul.mubr.bf16.gmra.mrb[0].mxu0 %v699
  %v894 = vpop.f32.mrb[0].mxu0
  %v895 = vadd.f32 0.0, %v894
  %v896 = vpop.f32.mrb[0].mxu0
  %v897 = vadd.f32 0.0, %v896
  %v898 = vpop.f32.mrb[0].mxu0
  %v899 = vadd.f32 0.0, %v898
  %v900 = vpop.f32.mrb[0].mxu0
  %v901 = vadd.f32 0.0, %v900
  %902 = vdwg.mxu0
  %903 = vmatprep.subr.bf16.mxu0 0
  %904 = vmatpush1.bf16.msra.mxu0 %v814
  %905 = vmatprep.subr.bf16.mxu0 0
  %906 = vmatpush1.bf16.msra.mxu0 %v817
  %907 = vmatprep.subr.bf16.mxu0 0
  %908 = vmatpush1.bf16.msra.mxu0 %v820
  %909 = vmatprep.subr.bf16.mxu0 0
  %910 = vmatpush1.bf16.msra.mxu0 %v823
  %911 = vmatprep.subr.bf16.mxu0 0
  %912 = vmatpush1.bf16.msra.mxu0 %v826
  %913 = vmatprep.subr.bf16.mxu0 0
  %914 = vmatpush1.bf16.msra.mxu0 %v829
  %915 = vmatprep.subr.bf16.mxu0 0
  %916 = vmatpush1.bf16.msra.mxu0 %v832
  %917 = vmatprep.subr.bf16.mxu0 0
  %918 = vmatpush1.bf16.msra.mxu0 %v835
  %919 = vmatprep.subr.bf16.mxu0 0
  %920 = vmatpush1.bf16.msra.mxu0 0
  %921 = vmatprep.subr.bf16.mxu0 0
  %922 = vmatpush1.bf16.msra.mxu0 0
  %923 = vmatprep.subr.bf16.mxu0 0
  %924 = vmatpush1.bf16.msra.mxu0 0
  %925 = vmatprep.subr.bf16.mxu0 0
  %926 = vmatpush1.bf16.msra.mxu0 0
  %927 = vmatprep.subr.bf16.mxu0 0
  %928 = vmatpush1.bf16.msra.mxu0 0
  %929 = vmatprep.subr.bf16.mxu0 0
  %930 = vmatpush1.bf16.msra.mxu0 0
  %931 = vmatprep.subr.bf16.mxu0 0
  %932 = vmatpush1.bf16.msra.mxu0 0
  %933 = vmatprep.subr.bf16.mxu0 0
  %934 = vmatpush1.bf16.msra.mxu0 0
  %935 = vmatprep.mubr.bf16.mxu0 0
  %936 = vmatmul.mubr.bf16.gmra.mrb[0].mxu0 %v699
  %v937 = vpop.f32.mrb[0].mxu0
  %v938 = vadd.f32 0.0, %v937
  %v939 = vpop.f32.mrb[0].mxu0
  %v940 = vpop.f32.mrb[0].mxu0
  %v941 = vadd.f32 0.0, %v940
  %v942 = vpop.f32.mrb[0].mxu0
  %943 = vdwg.mxu0
  %944 = vmatprep.subr.mxu0 0.0
  %945 = vmatpush1.msra.mxu0 %v895
  %946 = vmatprep.subr.mxu0 0.0
  %947 = vmatpush1.msra.mxu0 %v899
  %948 = vmatprep.subr.mxu0 0.0
  %949 = vmatpush1.msra.mxu0 0.0
  %950 = vmatprep.subr.mxu0 0.0
  %951 = vmatpush1.msra.mxu0 0.0
  %952 = vmatprep.subr.mxu0 0.0
  %953 = vmatpush1.msra.mxu0 0.0
  %954 = vmatprep.subr.mxu0 0.0
  %955 = vmatpush1.msra.mxu0 0.0
  %956 = vmatprep.subr.mxu0 0.0
  %957 = vmatpush1.msra.mxu0 0.0
  %958 = vmatprep.subr.mxu0 0.0
  %959 = vmatpush1.msra.mxu0 0.0
  %960 = vmatprep.subr.mxu0 0.0
  %961 = vmatpush1.msra.mxu0 0.0
  %962 = vmatprep.subr.mxu0 0.0
  %963 = vmatpush1.msra.mxu0 0.0
  %964 = vmatprep.subr.mxu0 0.0
  %965 = vmatpush1.msra.mxu0 0.0
  %966 = vmatprep.subr.mxu0 0.0
  %967 = vmatpush1.msra.mxu0 0.0
  %968 = vmatprep.subr.mxu0 0.0
  %969 = vmatpush1.msra.mxu0 0.0
  %970 = vmatprep.subr.mxu0 0.0
  %971 = vmatpush1.msra.mxu0 0.0
  %972 = vmatprep.subr.mxu0 0.0
  %973 = vmatpush1.msra.mxu0 0.0
  %974 = vmatprep.subr.mxu0 0.0
  %975 = vmatpush1.msra.mxu0 0.0
  %976 = vmatprep.subr.mxu0 0.0
  %977 = vmatpush1.msra.mxu0 0.0
  %978 = vmatprep.subr.mxu0 0.0
  %979 = vmatpush1.msra.mxu0 0.0
  %980 = vmatprep.subr.mxu0 0.0
  %981 = vmatpush1.msra.mxu0 0.0
  %982 = vmatprep.subr.mxu0 0.0
  %983 = vmatpush1.msra.mxu0 0.0
  %984 = vmatprep.subr.mxu0 0.0
  %985 = vmatpush1.msra.mxu0 0.0
  %986 = vmatprep.subr.mxu0 0.0
  %987 = vmatpush1.msra.mxu0 0.0
  %988 = vmatprep.subr.mxu0 0.0
  %989 = vmatpush1.msra.mxu0 0.0
  %990 = vmatprep.subr.mxu0 0.0
  %991 = vmatpush1.msra.mxu0 0.0
  %992 = vmatprep.subr.mxu0 0.0
  %993 = vmatpush1.msra.mxu0 0.0
  %994 = vmatprep.subr.mxu0 0.0
  %995 = vmatpush1.msra.mxu0 0.0
  %996 = vmatprep.subr.mxu0 0.0
  %997 = vmatpush1.msra.mxu0 0.0
  %998 = vmatprep.subr.mxu0 0.0
  %999 = vmatpush1.msra.mxu0 0.0
  %1000 = vmatprep.subr.mxu0 0.0
  %1001 = vmatpush1.msra.mxu0 0.0
  %1002 = vmatprep.subr.mxu0 0.0
  %1003 = vmatpush1.msra.mxu0 0.0
  %1004 = vmatprep.subr.mxu0 0.0
  %1005 = vmatpush1.msra.mxu0 0.0
  %1006 = vmatprep.subr.mxu0 0.0
  %1007 = vmatpush1.msra.mxu0 0.0
  %1008 = vmatprep.mubr.f32.mxu0 0.0
  %1009 = vmatmul.mubr.f32.gmra.mrb[0].mxu0 %v520
  %v1010 = vpop.f32.mrb[0].mxu0
  %v1011 = vadd.f32 0.0, %v1010
  %v1012 = vpop.f32.mrb[0].mxu0
  %1013 = vmatprep.mubr.f32.mxu0 0.0
  %1014 = vmatmul.mubr.f32.gmra.mrb[0].mxu0 %v523
  %v1015 = vpop.f32.mrb[0].mxu0
  %v1016 = vadd.f32 0.0, %v1015
  %v1017 = vpop.f32.mrb[0].mxu0
  %1018 = vdwg.mxu0
  %v1019 = vadd.f32 %v897, %v1011
  %v1020 = vadd.f32 %v901, %v1016
  %1021 = vmatprep.subr.mxu0 0.0
  %1022 = vmatpush1.msra.mxu0 %v938
  %1023 = vmatprep.subr.mxu0 0.0
  %1024 = vmatpush1.msra.mxu0 %v941
  %1025 = vmatprep.subr.mxu0 0.0
  %1026 = vmatpush1.msra.mxu0 0.0
  %1027 = vmatprep.subr.mxu0 0.0
  %1028 = vmatpush1.msra.mxu0 0.0
  %1029 = vmatprep.subr.mxu0 0.0
  %1030 = vmatpush1.msra.mxu0 0.0
  %1031 = vmatprep.subr.mxu0 0.0
  %1032 = vmatpush1.msra.mxu0 0.0
  %1033 = vmatprep.subr.mxu0 0.0
  %1034 = vmatpush1.msra.mxu0 0.0
  %1035 = vmatprep.subr.mxu0 0.0
  %1036 = vmatpush1.msra.mxu0 0.0
  %1037 = vmatprep.subr.mxu0 0.0
  %1038 = vmatpush1.msra.mxu0 0.0
  %1039 = vmatprep.subr.mxu0 0.0
  %1040 = vmatpush1.msra.mxu0 0.0
  %1041 = vmatprep.subr.mxu0 0.0
  %1042 = vmatpush1.msra.mxu0 0.0
  %1043 = vmatprep.subr.mxu0 0.0
  %1044 = vmatpush1.msra.mxu0 0.0
  %1045 = vmatprep.subr.mxu0 0.0
  %1046 = vmatpush1.msra.mxu0 0.0
  %1047 = vmatprep.subr.mxu0 0.0
  %1048 = vmatpush1.msra.mxu0 0.0
  %1049 = vmatprep.subr.mxu0 0.0
  %1050 = vmatpush1.msra.mxu0 0.0
  %1051 = vmatprep.subr.mxu0 0.0
  %1052 = vmatpush1.msra.mxu0 0.0
  %1053 = vmatprep.subr.mxu0 0.0
  %1054 = vmatpush1.msra.mxu0 0.0
  %1055 = vmatprep.subr.mxu0 0.0
  %1056 = vmatpush1.msra.mxu0 0.0
  %1057 = vmatprep.subr.mxu0 0.0
  %1058 = vmatpush1.msra.mxu0 0.0
  %1059 = vmatprep.subr.mxu0 0.0
  %1060 = vmatpush1.msra.mxu0 0.0
  %1061 = vmatprep.subr.mxu0 0.0
  %1062 = vmatpush1.msra.mxu0 0.0
  %1063 = vmatprep.subr.mxu0 0.0
  %1064 = vmatpush1.msra.mxu0 0.0
  %1065 = vmatprep.subr.mxu0 0.0
  %1066 = vmatpush1.msra.mxu0 0.0
  %1067 = vmatprep.subr.mxu0 0.0
  %1068 = vmatpush1.msra.mxu0 0.0
  %1069 = vmatprep.subr.mxu0 0.0
  %1070 = vmatpush1.msra.mxu0 0.0
  %1071 = vmatprep.subr.mxu0 0.0
  %1072 = vmatpush1.msra.mxu0 0.0
  %1073 = vmatprep.subr.mxu0 0.0
  %1074 = vmatpush1.msra.mxu0 0.0
  %1075 = vmatprep.subr.mxu0 0.0
  %1076 = vmatpush1.msra.mxu0 0.0
  %1077 = vmatprep.subr.mxu0 0.0
  %1078 = vmatpush1.msra.mxu0 0.0
  %1079 = vmatprep.subr.mxu0 0.0
  %1080 = vmatpush1.msra.mxu0 0.0
  %1081 = vmatprep.subr.mxu0 0.0
  %1082 = vmatpush1.msra.mxu0 0.0
  %1083 = vmatprep.subr.mxu0 0.0
  %1084 = vmatpush1.msra.mxu0 0.0
  %1085 = vmatprep.mubr.f32.mxu0 0.0
  %1086 = vmatmul.mubr.f32.gmra.mrb[0].mxu0 %v603
  %v1087 = vpop.f32.mrb[0].mxu0
  %v1088 = vadd.f32 0.0, %v1087
  %v1089 = vpop.f32.mrb[0].mxu0
  %1090 = vmatprep.mubr.f32.mxu0 0.0
  %1091 = vmatmul.mubr.f32.gmra.mrb[0].mxu0 %v606
  %v1092 = vpop.f32.mrb[0].mxu0
  %v1093 = vadd.f32 0.0, %v1092
  %v1094 = vpop.f32.mrb[0].mxu0
  %1095 = vdwg.mxu0
  %v1096 = vadd.f32 %v1019, %v1088
  %v1097 = vadd.f32 %v1020, %v1093
  %v1098 = vlaneseq
  %v1099 = vshrl.u32 %v1098, 7
  %v1100 = vsub.s32 0, %v1099
  %v1101 = vrot.slane %v33, %v1100
  %v1102 = vmul.f32 %v1096, %v1101
  %v1103 = vmul.f32 %v1097, %v1101
  %v1104 = vlaneseq
  %v1105 = vshrl.u32 %v1104, 7
  %v1106 = vsub.s32 0, %v1105
  %v1107 = vrot.slane %v34, %v1106
  %v1108 = vadd.f32 %v1102, %v1107
  %v1109 = vadd.f32 %v1103, %v1107
  %v1110 = vadd.f32 %v271, %v1108
  %v1111 = vadd.f32 %v272, %v1109
  %v1112 = vmax.f32 %v1110, 0.0
  %v1113 = vmax.f32 %v1111, 0.0
  %1114 = vst [vmem:[%s8] sm:$0xff] %v1112
  %1115 = vst [vmem:[%s8 + $0x8] sm:$0xff] %v1113
  // Predicated region
  $region34: #{concat_block_forward.1} parent=0 // pred_check
    _
  $region35: #{concat_block_forward.1} parent=0 // pred_check_branch
    %1117 = sbr.rel (0) target = $region37
  $region36: #{concat_block_forward.1} parent=0 // pred_region
    _
  $region37: #{concat_block_forward.1} parent=0 // pred_fallthru
    _
  // Predicated region
  $region38: #{concat_block_forward.1} parent=0 // pred_check
    _
  $region39: #{concat_block_forward.1} parent=0 // pred_check_branch
    %1119 = sbr.rel (0) target = $region41
  $region40: #{concat_block_forward.1} parent=0 // pred_region
    _
  $region41: #{concat_block_forward.1} parent=0 // pred_fallthru
    _

</llo_original>
